<compile_context>
chip_gen: v5e
topology: v5e:2x2
jax: 0.10.0
libtpu: 0.0.40
codegen_flags: <defaults>
</compile_context>

<pallas_src>
import jax
import jax.numpy as jnp
from jax.experimental import pallas as pl
from jax.experimental.pallas import tpu as pltpu

_LANES = 128
_SUBLANES = 8
_CHUNK_ROWS = 1024  # rows per in-kernel accumulation chunk (512 KiB of f32)


def _vmem_capacity_bytes():
    """Per-core VMEM capacity; conservative 64 MiB fallback (v7x) if unknown."""
    try:
        cap = int(getattr(pltpu.get_tpu_info(), "vmem_capacity_bytes", 0))
        if cap > 0:
            return cap
    except Exception:
        pass
    return 64 << 20


def _make_mse_kernel(tile_rows, steps, rows_data, need_mask, chunk_rows):
    n_full = tile_rows // chunk_rows
    rem_rows = tile_rows - n_full * chunk_rows

    def kernel(pred_ref, true_ref, out_ref, acc_ref):
        # pred_ref / true_ref: (tile_rows, 128) VMEM input tiles
        # out_ref            : (1, 1) SMEM partial sum (one per parallel slice)
        # acc_ref            : (8, 128) f32 VMEM vector accumulator
        i = pl.program_id(0)
        k = pl.program_id(1)

        @pl.when(k == 0)
        def _():
            acc_ref[...] = jnp.zeros_like(acc_ref)

        # Unclamped global row offset of this block.  Rows >= rows_data are
        # either OOB garbage (partial last block) or re-reads of the last
        # block (grid overshoot) and are zeroed by the mask below.
        block_row0 = (i * steps + k) * tile_rows

        def accum(start, nrows):
            p = pred_ref[pl.ds(start, nrows), :].astype(jnp.float32)
            t = true_ref[pl.ds(start, nrows), :].astype(jnp.float32)
            diff = p - t
            if need_mask:
                row_ids = (block_row0 + start) + jax.lax.broadcasted_iota(
                    jnp.int32, (nrows, _LANES), 0)
                diff = jnp.where(row_ids < rows_data, diff, 0.0)
            sq = diff * diff
            # (nrows, 128) -> (nrows//8, 8, 128); summing axis 0 is a pure
            # vreg-wise VPU accumulation (no per-step cross-lane XLU work).
            acc_ref[...] += sq.reshape(-1, _SUBLANES, _LANES).sum(axis=0)

        def body(c, carry):
            accum(pl.multiple_of(c * chunk_rows, chunk_rows), chunk_rows)
            return carry

        jax.lax.fori_loop(0, n_full, body, 0, unroll=n_full <= 8)
        if rem_rows:
            accum(n_full * chunk_rows, rem_rows)

        @pl.when(k == pl.num_programs(1) - 1)
        def _():
            # One cross-lane reduce per slice, done exactly once at the end.
            out_ref[0, 0] = jnp.sum(acc_ref[...])

    return kernel


def mse_loss(y_pred, y_true, *, target_block_bytes=None, num_splits=1):
    """mean((y_pred - y_true)**2) — matches CustomLoss.forward."""
    assert y_pred.shape == y_true.shape, (y_pred.shape, y_true.shape)
    assert y_pred.dtype == y_true.dtype, (y_pred.dtype, y_true.dtype)
    assert num_splits >= 1
    n_elem = y_pred.size
    if n_elem == 0:
        # torch.mean over an empty tensor is NaN.
        return jnp.float32(float("nan"))

    itemsize = jnp.dtype(y_pred.dtype).itemsize
    # Dtype-aware row packing: f32 -> 8, bf16 -> 16, int8/fp8 -> 32.  The
    # narrow dtype stays in HBM; the f32 cast happens in-kernel.
    min_rows = max(_SUBLANES, 32 // itemsize)

    vmem_cap = _vmem_capacity_bytes()
    if target_block_bytes is None:
        # ~8 MiB/input on 128-MiB-VMEM parts (v5e/v6e), ~4 MiB on v7x (64 MiB).
        target_block_bytes = (8 << 20) if vmem_cap >= (96 << 20) else (4 << 20)

    # ----- lane-dense (rows, 128) view + tile size ---------------------------
    rows_data = -(-n_elem // _LANES)                # rows holding real data
    per_split = -(-rows_data // num_splits)
    cap_up = -(-per_split // min_rows) * min_rows   # per-slice row budget
    cap_in = (rows_data // min_rows) * min_rows     # largest block <= array rows
    tile_cap = max(min_rows, min(cap_up, cap_in))
    want = (target_block_bytes // (_LANES * itemsize) // min_rows) * min_rows
    tile_rows = min(max(min_rows, want), tile_cap)

    rows_arr = max(rows_data, tile_rows)            # rows of the array we pass
    n_blocks = -(-rows_arr // tile_rows)
    steps = -(-n_blocks // num_splits)
    # Any (unclamped) grid row beyond the real data must be masked in-kernel.
    need_mask = num_splits * steps * tile_rows > rows_data
    need_clamp = num_splits * steps > n_blocks      # grid overshoot

    pred_flat = y_pred.reshape(-1)
    true_flat = y_true.reshape(-1)
    pad = rows_arr * _LANES - n_elem
    if pad:
        # Only hit when n_elem isn't lane-aligned (pad < 128 elements) or the
        # whole input is smaller than one min_rows x 128 tile — never the old
        # O(N) pad up to the full grid.  Padded zeros contribute 0 to the sum.
        # TODO(synk): if this small copy ever shows in profiles, try
        # CompilerParams(allow_input_fusion=...) to fuse the pad into the read.
        pred_flat = jnp.pad(pred_flat, (0, pad))
        true_flat = jnp.pad(true_flat, (0, pad))
    pred2d = pred_flat.reshape(rows_arr, _LANES)    # free for contiguous inputs
    true2d = true_flat.reshape(rows_arr, _LANES)

    if need_clamp:
        last_block = n_blocks - 1

        def in_index(i, k):
            return (jnp.minimum(i * steps + k, last_block), 0)
    else:

        def in_index(i, k):
            return (i * steps + k, 0)

    in_spec = pl.BlockSpec((tile_rows, _LANES), in_index)

    chunk_rows = min(_CHUNK_ROWS, tile_rows)
    kernel = _make_mse_kernel(tile_rows, steps, rows_data, need_mask, chunk_rows)

    block_bytes = tile_rows * _LANES * itemsize
    # 2 inputs x 2 pipeline buffers x block + chunked f32 temps + margin,
    # kept well inside physical VMEM (64 MiB/TC on v7x, 128 MiB on v5e/v6e).
    vmem_limit = min(4 * block_bytes + (16 << 20), (vmem_cap * 3) // 4)
    vmem_limit = max(vmem_limit, 32 << 20)

    partials = pl.pallas_call(
        kernel,
        out_shape=jax.ShapeDtypeStruct((num_splits, 1), jnp.float32),
        grid_spec=pltpu.PrefetchScalarGridSpec(
            num_scalar_prefetch=0,
            grid=(num_splits, steps),
            in_specs=[in_spec, in_spec],
            out_specs=pl.BlockSpec(
                (1, 1), lambda i, k: (i, 0), memory_space=pltpu.SMEM
            ),
            scratch_shapes=[pltpu.VMEM((_SUBLANES, _LANES), jnp.float32)],
        ),
        compiler_params=pltpu.CompilerParams(
            # Slice axis first, reduction axis last.  Default 2-deep pipeline
            # buffering is kept (HBM-bound; deeper buffers only burn VMEM).
            # TODO(synk): on v7x, confirm via xprof that this axis shards
            # across both TensorCores; otherwise switch to pltpu.CORE_PARALLEL
            # or pl.core_map with explicit per-core partial sums.
            dimension_semantics=("parallel", "arbitrary"),
            vmem_limit_bytes=int(vmem_limit),
        ),
        cost_estimate=pl.CostEstimate(
            flops=3 * n_elem,
            transcendentals=0,
            bytes_accessed=2 * rows_arr * _LANES * itemsize + 4 * num_splits,
        ),
    )(pred2d, true2d)

    return jnp.sum(partials) / jnp.float32(n_elem)


if __name__ == "__main__":
    key = jax.random.PRNGKey(0)
    k1, k2, k3, k4, k5, k6 = jax.random.split(key, 6)

    # NCHW inputs, same convention as the PyTorch module's callers.
    y_pred = jax.random.normal(k1, (2, 4, 16, 16), dtype=jnp.float32)
    y_true = jax.random.normal(k2, (2, 4, 16, 16), dtype=jnp.float32)
    loss = mse_loss(y_pred, y_true)
    jax.block_until_ready(loss)
    ref = jnp.mean(jnp.square(y_pred - y_true))
    assert jnp.allclose(loss, ref, rtol=1e-5, atol=1e-6), (loss, ref)

    # Element count not a multiple of 128: tiny lane-pad path (<128 elems).
    yp2 = jax.random.normal(k3, (2, 3, 17, 19), dtype=jnp.float32)
    yt2 = jax.random.normal(k4, (2, 3, 17, 19), dtype=jnp.float32)
    loss2 = mse_loss(yp2, yt2)
    jax.block_until_ready(loss2)
    ref2 = jnp.mean(jnp.square(yp2 - yt2))
    assert jnp.allclose(loss2, ref2, rtol=1e-5, atol=1e-6), (loss2, ref2)

    # Force the multi-slice / partial-last-block / grid-overshoot path
    # (in-kernel tail masking + clamped index_map) with tiny tiles.
    yp3 = jax.random.normal(k5, (24, 128), dtype=jnp.float32)
    yt3 = jax.random.normal(k6, (24, 128), dtype=jnp.float32)
    loss3 = mse_loss(yp3, yt3, target_block_bytes=8 * 128 * 4, num_splits=2)
    jax.block_until_ready(loss3)
    ref3 = jnp.mean(jnp.square(yp3 - yt3))
    assert jnp.allclose(loss3, ref3, rtol=1e-5, atol=1e-6), (loss3, ref3)

    print("KERNEL_OK")
</pallas_src>

<mosaic_0001>
module attributes {stable_mosaic.version = 11 : i64} {
  func.func @kernel(%arg0: i32, %arg1: i32, %arg2: memref<16x128xf32, #tpu.memory_space<vmem>>, %arg3: memref<16x128xf32, #tpu.memory_space<vmem>>, %arg4: memref<1x1xf32, #tpu.memory_space<smem>>, %arg5: memref<8x128xf32, #tpu.memory_space<vmem>>) attributes {dimension_semantics = [#tpu.dimension_semantics<parallel>, #tpu.dimension_semantics<arbitrary>], iteration_bounds = array<i64: 1, 1>, scalar_prefetch = 0 : i64, scratch_operands = 1 : i64, tpu.core_type = #tpu.core_type<tc>, window_params = [{transform_indices = @transform_0, window_bounds = array<i64: 16, 128>}, {transform_indices = @transform_1, window_bounds = array<i64: 16, 128>}, {transform_indices = @transform_2, window_bounds = array<i64: 1, 1>}]} {
    %c0_i32 = arith.constant 0 : i32
    %0 = arith.cmpi eq, %arg1, %c0_i32 : i32
    %1 = arith.extui %0 : i1 to i32
    %c0_i32_0 = arith.constant 0 : i32
    %2 = arith.cmpi ne, %1, %c0_i32_0 : i32
    scf.if %2 {
      %cst_9 = arith.constant 0.000000e+00 : f32
      %19 = vector.broadcast %cst_9 : f32 to vector<8x128xf32>
      %c0_10 = arith.constant 0 : index
      %c0_11 = arith.constant 0 : index
      %20 = vector.load %arg5[%c0_10, %c0_11] : memref<8x128xf32, #tpu.memory_space<vmem>>, vector<8x128xf32>
      tpu.vector_store %arg5[%c0_10, %c0_11], %19 {strides = array<i32>} : memref<8x128xf32, #tpu.memory_space<vmem>>, vector<8x128xf32>,
    } else {
    }
    %c0_i32_1 = arith.constant 0 : i32
    %c16_i32 = arith.constant 16 : i32
    %3 = arith.muli %c0_i32_1, %c16_i32 : i32
    %4 = tpu.assume_multiple %3, 16 : i32
    %5 = arith.index_cast %4 : i32 to index
    %c0 = arith.constant 0 : index
    %6 = vector.load %arg2[%5, %c0] : memref<16x128xf32, #tpu.memory_space<vmem>>, vector<16x128xf32>
    %7 = arith.index_cast %4 : i32 to index
    %c0_2 = arith.constant 0 : index
    %8 = vector.load %arg3[%7, %c0_2] : memref<16x128xf32, #tpu.memory_space<vmem>>, vector<16x128xf32>
    %9 = arith.subf %6, %8 : vector<16x128xf32>
    %10 = arith.mulf %9, %9 : vector<16x128xf32>
    %c0_3 = arith.constant 0 : index
    %c0_4 = arith.constant 0 : index
    %11 = vector.load %arg5[%c0_3, %c0_4] : memref<8x128xf32, #tpu.memory_space<vmem>>, vector<8x128xf32>
    %12 = vector.shape_cast %10 : vector<16x128xf32> to vector<2x8x128xf32>
    %cst = arith.constant dense<0.000000e+00> : vector<8x128xf32>
    %13 = vector.multi_reduction <add>, %12, %cst [0] : vector<2x8x128xf32> to vector<8x128xf32>
    %14 = arith.addf %11, %13 : vector<8x128xf32>
    %c0_5 = arith.constant 0 : index
    %c0_6 = arith.constant 0 : index
    %15 = vector.load %arg5[%c0_5, %c0_6] : memref<8x128xf32, #tpu.memory_space<vmem>>, vector<8x128xf32>
    tpu.vector_store %arg5[%c0_5, %c0_6], %14 {strides = array<i32>} : memref<8x128xf32, #tpu.memory_space<vmem>>, vector<8x128xf32>,
    %c1_i32 = arith.constant 1 : i32
    %c0_i32_7 = arith.constant 0 : i32
    %16 = arith.cmpi eq, %arg1, %c0_i32_7 : i32
    %17 = arith.extui %16 : i1 to i32
    %c0_i32_8 = arith.constant 0 : i32
    %18 = arith.cmpi ne, %17, %c0_i32_8 : i32
    scf.if %18 {
      %c0_9 = arith.constant 0 : index
      %c0_10 = arith.constant 0 : index
      %19 = vector.load %arg5[%c0_9, %c0_10] : memref<8x128xf32, #tpu.memory_space<vmem>>, vector<8x128xf32>
      %20 = vector.shape_cast %19 : vector<8x128xf32> to vector<1x8x128xf32>
      %cst_11 = arith.constant dense<0.000000e+00> : vector<1xf32>
      %21 = vector.multi_reduction <add>, %20, %cst_11 [1, 2] : vector<1x8x128xf32> to vector<1xf32>
      %22 = vector.shape_cast %21 : vector<1xf32> to vector<1x1x1xf32>
      %23 = vector.extract %22[0, 0, 0] : f32 from vector<1x1x1xf32>
      %c0_12 = arith.constant 0 : index
      %c0_13 = arith.constant 0 : index
      %24 = memref.load %arg4[%c0_12, %c0_13] : memref<1x1xf32, #tpu.memory_space<smem>>
      memref.store %23, %arg4[%c0_12, %c0_13] : memref<1x1xf32, #tpu.memory_space<smem>>
    } else {
    }
    return
  }
  func.func @transform_0(%arg0: i32, %arg1: i32) -> (i32, i32) {
    %c1_i32 = arith.constant 1 : i32
    %0 = arith.muli %arg0, %c1_i32 : i32
    %1 = arith.addi %0, %arg1 : i32
    %c0_i32 = arith.constant 0 : i32
    %c0_i32_0 = arith.constant 0 : i32
    return %1, %c0_i32 : i32, i32
  }
  func.func @transform_1(%arg0: i32, %arg1: i32) -> (i32, i32) {
    %c1_i32 = arith.constant 1 : i32
    %0 = arith.muli %arg0, %c1_i32 : i32
    %1 = arith.addi %0, %arg1 : i32
    %c0_i32 = arith.constant 0 : i32
    %c0_i32_0 = arith.constant 0 : i32
    return %1, %c0_i32 : i32, i32
  }
  func.func @transform_2(%arg0: i32, %arg1: i32) -> (i32, i32) {
    %c0_i32 = arith.constant 0 : i32
    %c0_i32_0 = arith.constant 0 : i32
    return %arg0, %c0_i32 : i32, i32
  }
}

</mosaic_0001>

<llo_original>
// kernel: tpu_custom_call.1
$region0: #{tpu_custom_call.1}
  #allocation0 [shape = 'u32[]', space=smem, size = 0x4, offset = 0x4, fixed_abs, tag = 'smem constant byte address 0x4 - core index']
  #allocation1 [shape = 'u32[72,128]{1,0:T(1,128)}', space=vmem, size = 0x9000, scoped, tag = 'internal scratch']
  #allocation2 [shape = 'f32[8,128]{1,0:T(8,128)}', space=vmem, size = 0x1000, scoped, tag = 'scratch operand']
  %s0 = inlined_call_operand.hbm [shape: f32[16,128], index: 0, kind: input, shape index: {}]
  %s1 = inlined_call_operand.hbm [shape: f32[16,128], index: 1, kind: input, shape index: {}]
  %s2 = inlined_call_operand.hbm [shape: f32[1,1], index: 2, kind: output, shape index: {}]
  %s3 = sld [smem:[#allocation0]]
  $region34: #{tpu_custom_call.1} parent=0
    _
  %s5 = ssub.s32 1, %s3
  %s6 = scalar_select 0, %s5, %s3
  $region1: #{tpu_custom_call.1} parent=0
    #allocation3 [shape = 'u8[8192]{0}', space=vmem, size = 0x2000, scoped, tag = 'input window, operand 0, single buffered']
    #allocation4 [shape = 's32[1]{0}', space=sflag, size = 0x4, scoped, tag = 'scoped memory for tpu_custom_call.1']
    #allocation5 [shape = 's32[1]{0}', space=sflag, size = 0x4, scoped, tag = 'scoped memory for tpu_custom_call.1']
    #allocation6 [shape = 'u8[8192]{0}', space=vmem, size = 0x2000, scoped, tag = 'input window, operand 1, single buffered']
    #allocation7 [shape = 's32[1]{0}', space=sflag, size = 0x4, scoped, tag = 'scoped memory for tpu_custom_call.1']
    #allocation8 [shape = 'u8[512]{0}', space=smem, size = 0x200, scoped, tag = 'output window, operand 0, single buffered']
    %7 = vsyncpa [#allocation4], 0
    %8 = vsyncpa [#allocation7], 0
    %9 = vsyncpa [#allocation5], 0
    // Predicated region
    $region2: #{tpu_custom_call.1} parent=1 // pred_check
      _
    $region3: #{tpu_custom_call.1} parent=1 // pred_check_branch
      %11 = sbr.rel (0) target = $region5
    $region4: #{tpu_custom_call.1} parent=1 // pred_region
      %s12 = sadd.s32 0, 0
      %s13 = smul.u32 2, %s12
      %15 = vsyncadd [#allocation4], 0
      %s16 = smul.addr %s13, 8
      %s17 = scalar_lea.hbm %s0, %s16
      %s18 = sshll.u32 %s17, 4
      %s19 = int_to_ptr.hbm [resolvable:$true] %s18
      %s20 = sshll.u32 [#allocation3], 4
      %s21 = int_to_ptr.vmem [resolvable:$true] %s20
      %26 = dma.hbm_to_vmem [thread:$0]  %s19, 256, %s21, [#allocation4], 128, 128, 8
    $region5: #{tpu_custom_call.1} parent=1 // pred_fallthru
      _
    // Predicated region
    $region6: #{tpu_custom_call.1} parent=1 // pred_check
      _
    $region7: #{tpu_custom_call.1} parent=1 // pred_check_branch
      %28 = sbr.rel (0) target = $region9
    $region8: #{tpu_custom_call.1} parent=1 // pred_region
      %s29 = sadd.s32 0, 0
      %s30 = smul.u32 2, %s29
      %32 = vsyncadd [#allocation7], 0
      %s33 = smul.addr %s30, 8
      %s34 = scalar_lea.hbm %s1, %s33
      %s35 = sshll.u32 %s34, 4
      %s36 = int_to_ptr.hbm [resolvable:$true] %s35
      %s37 = sshll.u32 [#allocation6], 4
      %s38 = int_to_ptr.vmem [resolvable:$true] %s37
      %43 = dma.hbm_to_vmem [thread:$0]  %s36, 256, %s38, [#allocation7], 128, 128, 8
    $region9: #{tpu_custom_call.1} parent=1 // pred_fallthru
      _
    // Predicated region
    $region10: #{tpu_custom_call.1} parent=1 // pred_check
      _
    $region11: #{tpu_custom_call.1} parent=1 // pred_check_branch
      %45 = sbr.rel (0) target = $region13
    $region12: #{tpu_custom_call.1} parent=1 // pred_region
      %47 = dma.done [#allocation4], 256
    $region13: #{tpu_custom_call.1} parent=1 // pred_fallthru
      _
    // Predicated region
    $region14: #{tpu_custom_call.1} parent=1 // pred_check
      _
    $region15: #{tpu_custom_call.1} parent=1 // pred_check_branch
      %49 = sbr.rel (0) target = $region17
    $region16: #{tpu_custom_call.1} parent=1 // pred_region
      %51 = dma.done [#allocation7], 256
    $region17: #{tpu_custom_call.1} parent=1 // pred_fallthru
      _
    %s52 = sadd.s32 0, 0
    %s53 = smul.u32 2, %s52
    %s54 = sadd.s32 0, 0
    %s55 = smul.u32 2, %s54
    %p56 = scmp.eq.s32.totalorder 0, 0
    // Predicated region
    $region18: #{tpu_custom_call.1} parent=1 // pred_check
      %p57 = pneg %p56
    $region19: #{tpu_custom_call.1} parent=1 // pred_check_branch
      %59 = sbr.rel (%p57) target = $region21
    $region20: #{tpu_custom_call.1} parent=1 // pred_region
      %60 = vst [vmem:[#allocation2] sm:$0xff] 0.0
    $region21: #{tpu_custom_call.1} parent=1 // pred_fallthru
      _
    %v61 = vld [vmem:[#allocation3] sm:$0xff]
    %v62 = vld [vmem:[#allocation3 + $0x8] sm:$0xff]
    %v63 = vld [vmem:[#allocation6] sm:$0xff]
    %v64 = vld [vmem:[#allocation6 + $0x8] sm:$0xff]
    %v65 = vsub.f32 %v61, %v63
    %v66 = vsub.f32 %v62, %v64
    %v67 = vmul.f32 %v65, %v65
    %v68 = vmul.f32 %v66, %v66
    %v69 = vld [vmem:[#allocation2] sm:$0xff]
    %v70 = vadd.f32 %v67, %v68
    %v71 = vadd.f32 %v69, %v70
    %72 = vst [vmem:[#allocation2] sm:$0xff] %v71
    // Predicated region
    $region22: #{tpu_custom_call.1} parent=1 // pred_check
      %p73 = pneg %p56
    $region23: #{tpu_custom_call.1} parent=1 // pred_check_branch
      %75 = sbr.rel (%p73) target = $region25
    $region24: #{tpu_custom_call.1} parent=1 // pred_region
      %v76 = vld [vmem:[#allocation2] sm:$0xff]
      %77 = vadd.xlane.f32.xlu0 %v76
      %v78 = vpop.xlane.xlu0 %77
      %v79 = vrot.slane %v78, 4
      %v80 = vadd.f32 %v78, %v79
      %v81 = vrot.slane %v80, 2
      %v82 = vadd.f32 %v80, %v81
      %v83 = vrot.slane %v82, 1
      %v84 = vadd.f32 %v82, %v83
      %s85 = vtos %v84
      %s86 = scalar_lea.smem [#allocation8], 0
      %87 = sst [smem:[%s86]] %s85
    $region25: #{tpu_custom_call.1} parent=1 // pred_fallthru
      _
    // Predicated region
    $region26: #{tpu_custom_call.1} parent=1 // pred_check
      _
    $region27: #{tpu_custom_call.1} parent=1 // pred_check_branch
      %89 = sbr.rel (0) target = $region29
    $region28: #{tpu_custom_call.1} parent=1 // pred_region
      %91 = vsyncadd [#allocation5], 0
      %s93 = sshll.u32 %s2, 4
      %s94 = int_to_ptr.hbm [resolvable:$true] %s93
      %96 = dma.smem_to_hbm [#allocation8], 16, %s94, [#allocation5]
    $region29: #{tpu_custom_call.1} parent=1 // pred_fallthru
      _
    // Predicated region
    $region30: #{tpu_custom_call.1} parent=1 // pred_check
      _
    $region31: #{tpu_custom_call.1} parent=1 // pred_check_branch
      %98 = sbr.rel (0) target = $region33
    $region32: #{tpu_custom_call.1} parent=1 // pred_region
      %100 = dma.done [#allocation5], 16
    $region33: #{tpu_custom_call.1} parent=1 // pred_fallthru
      _
    %101 = sfence
    %102 = vsyncpa [#allocation4], 1
    %103 = vsyncpa [#allocation7], 1
    %104 = vsyncpa [#allocation5], 1

</llo_original>
